<compile_context>
chip_gen: v5e
topology: v5e:2x2
jax: 0.10.0
libtpu: 0.0.40
codegen_flags: <defaults>
</compile_context>

<pallas_src>
import functools
import math

import jax
import jax.numpy as jnp
from jax.experimental import pallas as pl
from jax.experimental.pallas import tpu as pltpu


def _time_conv_kernel(x_ref, w_ref, init_ref, o_ref, carry_ref, *,
                      dilation, precision):
    # x_ref:     (1, C, tl)   current time tile, compute dtype (bf16 by default)
    # w_ref:     (2C, C)      stacked taps [w1; w0], compute dtype
    # init_ref:  (C, d)       w0 @ pad (f32), the "history" before t = 0
    # o_ref:     (1, C, tl)   output tile (f32)
    # carry_ref: (C, d)       last d columns of the previous tile's Y0 = w0 @ x
    j = pl.program_id(1)

    @pl.when(j == 0)
    def _():
        # first time tile of this batch: history is the learned pad contribution
        carry_ref[...] = init_ref[...]

    x = x_ref[0]                                       # (C, tl)
    C, tl = x.shape

    # single MXU push: both taps at once
    y = jnp.dot(w_ref[...], x,
                preferred_element_type=jnp.float32,
                precision=precision)                   # (2C, tl) f32
    y1 = y[:C, :]                                      # w1 @ x[:, t]
    y0 = y[C:, :]                                      # w0 @ x[:, t]  -> used at t + d

    # output-side shift by d: first d columns come from the carry
    shifted = jnp.concatenate([carry_ref[...], y0[:, : tl - dilation]], axis=1)
    o_ref[0] = (y1 + shifted).astype(o_ref.dtype)

    # stash the Y0 tail for the next time tile of this batch
    carry_ref[...] = y0[:, tl - dilation:]


def _scoped_vmem_limit_bytes():
    """Generation-aware scoped-VMEM limit with headroom (v7x: ~48 MiB of 64,
    v5e/v6e: capped at 96 MiB of 128)."""
    cap = None
    try:
        cap = getattr(pltpu.get_tpu_info(), "vmem_capacity_bytes", None)
    except Exception:
        cap = None
    if not cap:
        cap = 64 * 1024 * 1024          # conservative default (v7x per-TC)
    return int(min(cap * 3 // 4, 96 * 1024 * 1024))


def _pick_time_tile(L, C, d, vmem_limit, compute_itemsize):
    """Full L for short sequences, otherwise the biggest multiple of 128 whose
    double-buffered x + out tiles (plus the resident weight/carry buffers) fit
    comfortably inside the scoped VMEM limit."""
    if L <= 512:
        return L
    w_bytes = (2 * C) * C * compute_itemsize           # stacked weights
    fixed = 2 * w_bytes                                 # double-buffered weights
    fixed += 2 * C * d * 4 + C * d * 4                  # init (x2) + carry
    budget = int(vmem_limit * 0.8) - fixed
    per_col = 2 * C * compute_itemsize + 2 * C * 4      # x + f32 out, double-buffered
    cols = max(budget // max(per_col, 1), 128)
    tl = min(cols, L, 4096)
    return max(128, (tl // 128) * 128)


def time_conv(x, weight, pad, dilation=1, *, time_tile=None,
              compute_dtype=jnp.bfloat16):
    """TimeConv forward.

    x:      (B, C, L) float32, NCL like the PyTorch module
    weight: (C, C, 2) float32, nn.Conv1d(dim, dim, 2, bias=False).weight (O, I, K)
    pad:    (1, C, 1) float32, the learned left-pad parameter
    compute_dtype: dtype of the MXU operands (bf16 default; f32 -> Precision.HIGHEST)
    returns (B, C, L) in x.dtype
    """
    B, C, L = x.shape
    O, Ci, K = weight.shape
    assert O == C and Ci == C and K == 2, "TimeConv uses Conv1d(dim, dim, 2, bias=False)"
    assert pad.shape == (1, C, 1)
    d = int(dilation)
    assert d >= 1

    compute_dtype = jnp.dtype(compute_dtype)
    precision = (jax.lax.Precision.HIGHEST
                 if compute_dtype == jnp.dtype(jnp.float32) else None)

    vmem_limit = _scoped_vmem_limit_bytes()
    tl = time_tile if time_tile is not None else _pick_time_tile(
        L, C, d, vmem_limit, compute_dtype.itemsize)
    tl = min(tl, L)
    assert tl == L or tl % 128 == 0, "time tile must be a multiple of 128 (or full length)"
    assert d < tl, "dilation must be smaller than the time tile"

    out_dtype = x.dtype
    w1 = weight[:, :, 1].astype(jnp.float32)            # tap on the current sample
    w0 = weight[:, :, 0].astype(jnp.float32)            # tap on the previous sample
    w_stacked = jnp.concatenate([w1, w0], axis=0).astype(compute_dtype)     # (2C, C)
    # history seed for t < d: w0 @ pad, computed once in full f32 (exact)
    init = jnp.broadcast_to(jnp.dot(w0, jnp.reshape(pad.astype(jnp.float32), (C, 1))),
                            (C, d)).astype(jnp.float32)
    x_c = x.astype(compute_dtype)

    n_t = pl.cdiv(L, tl)
    cost = pl.CostEstimate(
        flops=4 * B * L * C * C,                         # one (2C,C)@(C,L) matmul per batch
        transcendentals=0,
        bytes_accessed=(x_c.size * compute_dtype.itemsize
                        + B * C * L * jnp.dtype(out_dtype).itemsize
                        + w_stacked.size * compute_dtype.itemsize
                        + init.size * 4),
    )

    # TODO(synk): single-buffer the constant-index weight/init blocks via
    # pipeline_mode=pl.Buffered(1) when C is large, and add a second parallel
    # split (channels or wrapper-level L halves) so v7x's 2nd TensorCore has
    # work when B == 1.
    return pl.pallas_call(
        functools.partial(_time_conv_kernel, dilation=d, precision=precision),
        out_shape=jax.ShapeDtypeStruct((B, C, L), out_dtype),
        grid=(B, n_t),
        in_specs=[
            pl.BlockSpec((1, C, tl), lambda b, j: (b, 0, j)),   # x time tile
            pl.BlockSpec((2 * C, C), lambda b, j: (0, 0)),      # stacked taps, resident
            pl.BlockSpec((C, d), lambda b, j: (0, 0)),          # w0 @ pad history seed
        ],
        out_specs=pl.BlockSpec((1, C, tl), lambda b, j: (b, 0, j)),
        scratch_shapes=[pltpu.VMEM((C, d), jnp.float32)],       # cross-tile Y0 carry
        compiler_params=pltpu.CompilerParams(
            dimension_semantics=("parallel", "arbitrary"),
            vmem_limit_bytes=vmem_limit,
        ),
        cost_estimate=cost,
    )(x_c, w_stacked, init)


def _reference(x, weight, pad, dilation):
    """Pure-JAX reference matching the PyTorch forward: cat(pad, x) -> dilated conv."""
    B, C, L = x.shape
    pad_exp = jnp.broadcast_to(pad, (B, C, dilation))
    x_cat = jnp.concatenate([pad_exp, x], axis=2)
    return jax.lax.conv_general_dilated(
        x_cat, weight, window_strides=(1,), padding="VALID",
        rhs_dilation=(dilation,),
        dimension_numbers=("NCH", "OIH", "NCH"))


if __name__ == "__main__":
    key = jax.random.PRNGKey(0)
    kx, kw, kp = jax.random.split(key, 3)

    B, C, L = 2, 32, 256
    x = jax.random.normal(kx, (B, C, L), dtype=jnp.float32)
    fan_in = C * 2
    bound = 1.0 / math.sqrt(fan_in)
    weight = jax.random.uniform(kw, (C, C, 2), dtype=jnp.float32,
                                minval=-bound, maxval=bound)
    pad = 0.1 * jax.random.normal(kp, (1, C, 1), dtype=jnp.float32)

    # bf16 MXU operands with f32 accumulation -> ~1e-3..1e-2 deviation vs f32
    TOL = dict(atol=2e-2, rtol=2e-2)

    # config 1: dilation=2, time tile 128 -> two time tiles per batch
    # (exercises the cross-tile Y0 carry)
    out1 = jax.block_until_ready(time_conv(x, weight, pad, dilation=2, time_tile=128))
    ref1 = _reference(x, weight, pad, 2)
    assert out1.shape == (B, C, L)
    assert jnp.allclose(out1, ref1, **TOL)

    # config 2: dilation=1, auto tile (single full-length tile per batch)
    out2 = jax.block_until_ready(time_conv(x, weight, pad, dilation=1))
    ref2 = _reference(x, weight, pad, 1)
    assert jnp.allclose(out2, ref2, **TOL)

    # config 3: L not a multiple of the time tile (partial final block)
    L3 = 200
    x3 = x[:, :, :L3]
    out3 = jax.block_until_ready(time_conv(x3, weight, pad, dilation=2, time_tile=128))
    ref3 = _reference(x3, weight, pad, 2)
    assert out3.shape == (B, C, L3)
    assert jnp.allclose(out3, ref3, **TOL)

    print("KERNEL_OK")
</pallas_src>

<mosaic_0001>
module attributes {stable_mosaic.version = 11 : i64} {
  func.func @_time_conv_kernel(%arg0: i32, %arg1: i32, %arg2: memref<1x32x128xbf16, #tpu.memory_space<vmem>>, %arg3: memref<64x32xbf16, #tpu.memory_space<vmem>>, %arg4: memref<32x2xf32, #tpu.memory_space<vmem>>, %arg5: memref<1x32x128xf32, #tpu.memory_space<vmem>>, %arg6: memref<32x2xf32, #tpu.memory_space<vmem>>) attributes {dimension_semantics = [#tpu.dimension_semantics<parallel>, #tpu.dimension_semantics<arbitrary>], iteration_bounds = array<i64: 2, 2>, scalar_prefetch = 0 : i64, scratch_operands = 1 : i64, tpu.core_type = #tpu.core_type<tc>, window_params = [{transform_indices = @transform_0, window_bounds = array<i64: 1, 32, 128>}, {pipeline_mode = #tpu.pipeline_mode<synchronous>, transform_indices = @transform_1, window_bounds = array<i64: 64, 32>}, {pipeline_mode = #tpu.pipeline_mode<synchronous>, transform_indices = @transform_2, window_bounds = array<i64: 32, 2>}, {transform_indices = @transform_3, window_bounds = array<i64: 1, 32, 128>}]} {
    %c0_i32 = arith.constant 0 : i32
    %0 = arith.cmpi eq, %arg1, %c0_i32 : i32
    %1 = arith.extui %0 : i1 to i32
    %c0_i32_0 = arith.constant 0 : i32
    %2 = arith.cmpi ne, %1, %c0_i32_0 : i32
    scf.if %2 {
      %c0_12 = arith.constant 0 : index
      %c0_13 = arith.constant 0 : index
      %18 = vector.load %arg4[%c0_12, %c0_13] : memref<32x2xf32, #tpu.memory_space<vmem>>, vector<32x2xf32>
      %c0_14 = arith.constant 0 : index
      %c0_15 = arith.constant 0 : index
      %19 = vector.load %arg6[%c0_14, %c0_15] : memref<32x2xf32, #tpu.memory_space<vmem>>, vector<32x2xf32>
      tpu.vector_store %arg6[%c0_14, %c0_15], %18 {strides = array<i32>} : memref<32x2xf32, #tpu.memory_space<vmem>>, vector<32x2xf32>,
    } else {
    }
    %c0 = arith.constant 0 : index
    %c0_1 = arith.constant 0 : index
    %c0_2 = arith.constant 0 : index
    %3 = vector.load %arg2[%c0, %c0_1, %c0_2] : memref<1x32x128xbf16, #tpu.memory_space<vmem>>, vector<1x32x128xbf16>
    %4 = vector.shape_cast %3 : vector<1x32x128xbf16> to vector<32x128xbf16>
    %c0_3 = arith.constant 0 : index
    %c0_4 = arith.constant 0 : index
    %5 = vector.load %arg3[%c0_3, %c0_4] : memref<64x32xbf16, #tpu.memory_space<vmem>>, vector<64x32xbf16>
    %cst = arith.constant dense<0.000000e+00> : vector<64x128xf32>
    %6 = tpu.matmul %5, %4, %cst {dimension_numbers = #tpu.dot_dimension_numbers<[1], [0], [0], [1], [0, 0, 1, 1], [], []>} : vector<64x32xbf16>, vector<32x128xbf16>, vector<64x128xf32> -> vector<64x128xf32>
    %7 = vector.extract_strided_slice %6 {offsets = [0, 0], sizes = [32, 128], strides = [1, 1]} : vector<64x128xf32> to vector<32x128xf32>
    %8 = vector.extract_strided_slice %6 {offsets = [32, 0], sizes = [32, 128], strides = [1, 1]} : vector<64x128xf32> to vector<32x128xf32>
    %c0_5 = arith.constant 0 : index
    %c0_6 = arith.constant 0 : index
    %9 = vector.load %arg6[%c0_5, %c0_6] : memref<32x2xf32, #tpu.memory_space<vmem>>, vector<32x2xf32>
    %10 = vector.extract_strided_slice %8 {offsets = [0, 0], sizes = [32, 126], strides = [1, 1]} : vector<32x128xf32> to vector<32x126xf32>
    %11 = tpu.concatenate %9, %10 in 1 : vector<32x2xf32>, vector<32x126xf32> -> vector<32x128xf32>
    %12 = arith.addf %7, %11 : vector<32x128xf32>
    %c0_7 = arith.constant 0 : index
    %c0_8 = arith.constant 0 : index
    %c0_9 = arith.constant 0 : index
    %13 = vector.load %arg5[%c0_7, %c0_8, %c0_9] : memref<1x32x128xf32, #tpu.memory_space<vmem>>, vector<1x32x128xf32>
    %14 = vector.shape_cast %13 : vector<1x32x128xf32> to vector<32x128xf32>
    %15 = vector.shape_cast %12 : vector<32x128xf32> to vector<1x32x128xf32>
    tpu.vector_store %arg5[%c0_7, %c0_8, %c0_9], %15 {strides = array<i32>} : memref<1x32x128xf32, #tpu.memory_space<vmem>>, vector<1x32x128xf32>,
    %16 = vector.extract_strided_slice %8 {offsets = [0, 126], sizes = [32, 2], strides = [1, 1]} : vector<32x128xf32> to vector<32x2xf32>
    %c0_10 = arith.constant 0 : index
    %c0_11 = arith.constant 0 : index
    %17 = vector.load %arg6[%c0_10, %c0_11] : memref<32x2xf32, #tpu.memory_space<vmem>>, vector<32x2xf32>
    tpu.vector_store %arg6[%c0_10, %c0_11], %16 {strides = array<i32>} : memref<32x2xf32, #tpu.memory_space<vmem>>, vector<32x2xf32>,
    return
  }
  func.func @transform_0(%arg0: i32, %arg1: i32) -> (i32, i32, i32) {
    %c0_i32 = arith.constant 0 : i32
    %c0_i32_0 = arith.constant 0 : i32
    return %arg0, %c0_i32, %arg1 : i32, i32, i32
  }
  func.func @transform_1(%arg0: i32, %arg1: i32) -> (i32, i32) {
    %c0_i32 = arith.constant 0 : i32
    %c0_i32_0 = arith.constant 0 : i32
    %c0_i32_1 = arith.constant 0 : i32
    return %c0_i32, %c0_i32_0 : i32, i32
  }
  func.func @transform_2(%arg0: i32, %arg1: i32) -> (i32, i32) {
    %c0_i32 = arith.constant 0 : i32
    %c0_i32_0 = arith.constant 0 : i32
    %c0_i32_1 = arith.constant 0 : i32
    return %c0_i32, %c0_i32_0 : i32, i32
  }
  func.func @transform_3(%arg0: i32, %arg1: i32) -> (i32, i32, i32) {
    %c0_i32 = arith.constant 0 : i32
    %c0_i32_0 = arith.constant 0 : i32
    return %arg0, %c0_i32, %arg1 : i32, i32, i32
  }
}

</mosaic_0001>

<llo_original>
// kernel: tpu_custom_call.1
$region0: #{tpu_custom_call.1}
  #allocation0 [shape = 'u32[]', space=smem, size = 0x4, offset = 0x4, fixed_abs, tag = 'smem constant byte address 0x4 - core index']
  #allocation1 [shape = 'u32[72,128]{1,0:T(1,128)}', space=vmem, size = 0x9000, scoped, tag = 'internal scratch']
  #allocation2 [shape = 'f32[32,2]{1,0:T(8,128)}', space=vmem, size = 0x4000, scoped, tag = 'scratch operand']
  %s0 = inlined_call_operand.vmem [shape: bf16[2,32,256], index: 0, kind: input, shape index: {}]
  %s1 = inlined_call_operand.vmem [shape: bf16[64,32], index: 1, kind: input, shape index: {}]
  %s2 = inlined_call_operand.vmem [shape: f32[32,2], index: 2, kind: input, shape index: {}]
  %s3 = inlined_call_operand.hbm [shape: f32[2,32,256], index: 3, kind: output, shape index: {}]
  %s4 = sld [smem:[#allocation0]]
  $region90: #{tpu_custom_call.1} parent=0
    _
  %s6 = ssub.s32 1, %s4
  %s7 = scalar_select 0, %s6, %s4
  $region1: #{tpu_custom_call.1} parent=0
    #allocation3 [shape = 'u8[16384]{0}', space=vmem, size = 0x4000, scoped, tag = 'input window, operand 0']
    #allocation4 [shape = 'u8[32768]{0}', space=vmem, size = 0x8000, scoped, tag = 'output window, operand 0']
    #allocation5 [shape = 's32[2]{0}', space=sflag, size = 0x8, scoped, tag = 'scoped memory for tpu_custom_call.1']
    %8 = vsyncpa [#allocation5], 0
    %s9 = scalar_lea.sflag [#allocation5], 1
    %10 = vsyncpa %s9, 0
    loop: start=0, step=1, limit=6
    $region2: #{tpu_custom_call.1} parent=1 // loop_pre_header
      _
    $region3: #{tpu_custom_call.1} parent=1 // loop_header
      %s12 = sphi 0, %s16
      %p13 = scmp.ge.s32.totalorder %s12, 6
      %s19 = sphi 0, %s31
      %s20 = sphi 0, %s27
      %s21 = sphi 0, %s19
      %s22 = sphi 0, %s20
      %s23 = sphi 0, %s21
      %s24 = sphi 0, %s22
      %s36 = sphi 0, %s38
      %s39 = sphi 0, %s36
      %s40 = sphi 0, %s39
      %s56 = sphi 0, %s40
      %s60 = sphi 0, %s60
      %s62 = sphi 0, %s60
      %s63 = sphi 0, %s62
      %s77 = sphi 0, %s63
      %s81 = sphi 0, %s81
      %s83 = sphi 0, %s81
      %s84 = sphi 0, %s83
      %s98 = sphi 0, %s84
      %s106 = sphi 0, %s108
      %s109 = sphi 0, %s106
      %s110 = sphi 0, %s109
      %s126 = sphi 0, %s110
    $region4: #{tpu_custom_call.1} parent=1 // loop_header_branch
      %15 = sbr.rel (%p13) target = $region8
    $region5: #{tpu_custom_call.1} parent=1 // loop_body
      %s17 = ssub.s32 %s12, 1
      %s18 = ssub.s32 %s12, 2
      %s25 = sadd.s32 1, %s20
      %p26 = scmp.ge.s32.totalorder %s25, 2
      %s27 = scalar_select %p26, 0, %s25
      %s28 = sadd.s32 1, %s19
      %s29 = scalar_select %p26, %s28, %s19
      %p30 = scmp.ge.s32.totalorder %s29, 2
      %s31 = scalar_select %p30, 0, %s29
      %s32 = ssub.s32 %s19, %s31
      %s33 = ssub.s32 %s20, %s27
      %s34 = sor.u32 %s32, %s33
      %p35 = scmp.eq.s32.totalorder %s34, 0
      %s37 = sadd.s32 %s36, 1
      %s38 = scalar_select %p35, %s36, %s37
      %p41 = pneg %p35
      %p42 = scmp.eq.s32.totalorder %s12, 3
      %p43 = por %p41, %p42
      %p44 = scmp.ne.s32.totalorder %s36, %s39
      %p45 = scmp.eq.s32.totalorder %s12, 0
      %p46 = por %p44, %p45
      %p47 = scmp.ne.s32.totalorder %s36, %s39
      %p48 = scmp.eq.s32.totalorder %s17, 3
      %p49 = por %p47, %p48
      %p50 = scmp.ne.s32.totalorder %s39, %s40
      %p51 = scmp.eq.s32.totalorder %s17, 0
      %p52 = por %p50, %p51
      %p53 = scmp.ne.s32.totalorder %s39, %s40
      %p54 = scmp.eq.s32.totalorder %s18, 3
      %p55 = por %p53, %p54
      %p57 = scmp.ne.s32.totalorder %s40, %s56
      %p58 = scmp.eq.s32.totalorder %s18, 0
      %p59 = por %p57, %p58
      %s61 = sadd.s32 %s60, 1
      %p64 = scmp.eq.s32.totalorder %s12, 3
      %p65 = scmp.ne.s32.totalorder %s60, %s62
      %p66 = scmp.eq.s32.totalorder %s12, 0
      %p67 = por %p65, %p66
      %p68 = scmp.ne.s32.totalorder %s60, %s62
      %p69 = scmp.eq.s32.totalorder %s17, 3
      %p70 = por %p68, %p69
      %p71 = scmp.ne.s32.totalorder %s62, %s63
      %p72 = scmp.eq.s32.totalorder %s17, 0
      %p73 = por %p71, %p72
      %p74 = scmp.ne.s32.totalorder %s62, %s63
      %p75 = scmp.eq.s32.totalorder %s18, 3
      %p76 = por %p74, %p75
      %p78 = scmp.ne.s32.totalorder %s63, %s77
      %p79 = scmp.eq.s32.totalorder %s18, 0
      %p80 = por %p78, %p79
      %s82 = sadd.s32 %s81, 1
      %p85 = scmp.eq.s32.totalorder %s12, 3
      %p86 = scmp.ne.s32.totalorder %s81, %s83
      %p87 = scmp.eq.s32.totalorder %s12, 0
      %p88 = por %p86, %p87
      %p89 = scmp.ne.s32.totalorder %s81, %s83
      %p90 = scmp.eq.s32.totalorder %s17, 3
      %p91 = por %p89, %p90
      %p92 = scmp.ne.s32.totalorder %s83, %s84
      %p93 = scmp.eq.s32.totalorder %s17, 0
      %p94 = por %p92, %p93
      %p95 = scmp.ne.s32.totalorder %s83, %s84
      %p96 = scmp.eq.s32.totalorder %s18, 3
      %p97 = por %p95, %p96
      %p99 = scmp.ne.s32.totalorder %s84, %s98
      %p100 = scmp.eq.s32.totalorder %s18, 0
      %p101 = por %p99, %p100
      %s102 = ssub.s32 %s19, %s31
      %s103 = ssub.s32 %s20, %s27
      %s104 = sor.u32 %s102, %s103
      %p105 = scmp.eq.s32.totalorder %s104, 0
      %s107 = sadd.s32 %s106, 1
      %s108 = scalar_select %p105, %s106, %s107
      %p111 = pneg %p105
      %p112 = scmp.eq.s32.totalorder %s12, 3
      %p113 = por %p111, %p112
      %p114 = scmp.ne.s32.totalorder %s106, %s109
      %p115 = scmp.eq.s32.totalorder %s12, 0
      %p116 = por %p114, %p115
      %p117 = scmp.ne.s32.totalorder %s106, %s109
      %p118 = scmp.eq.s32.totalorder %s17, 3
      %p119 = por %p117, %p118
      %p120 = scmp.ne.s32.totalorder %s109, %s110
      %p121 = scmp.eq.s32.totalorder %s17, 0
      %p122 = por %p120, %p121
      %p123 = scmp.ne.s32.totalorder %s109, %s110
      %p124 = scmp.eq.s32.totalorder %s18, 3
      %p125 = por %p123, %p124
      %p127 = scmp.ne.s32.totalorder %s110, %s126
      %p128 = scmp.eq.s32.totalorder %s18, 0
      %p129 = por %p127, %p128
      %p130 = scmp.le.s32.totalorder 1, %s12
      %p131 = scmp.lt.s32.totalorder %s12, 5
      %p132 = pnand %p130, %p131
      %p133 = pneg %p132
      // Predicated region
      $region9: #{tpu_custom_call.1} parent=5 // pred_check
        _
      $region10: #{tpu_custom_call.1} parent=5 // pred_check_branch
        %135 = sbr.rel (%p132) target = $region12
      $region11: #{tpu_custom_call.1} parent=5 // pred_region
        %s136 = ssub.s32 %s12, 1
        // Predicated region
        $region13: #{tpu_custom_call.1} parent=11 // pred_check
          %p137 = pneg %p73
        $region14: #{tpu_custom_call.1} parent=11 // pred_check_branch
          %139 = sbr.rel (%p137) target = $region16
        $region15: #{tpu_custom_call.1} parent=11 // pred_region
          _
        $region16: #{tpu_custom_call.1} parent=11 // pred_fallthru
          _
        // Predicated region
        $region17: #{tpu_custom_call.1} parent=11 // pred_check
          %p140 = pneg %p94
        $region18: #{tpu_custom_call.1} parent=11 // pred_check_branch
          %142 = sbr.rel (%p140) target = $region20
        $region19: #{tpu_custom_call.1} parent=11 // pred_region
          _
        $region20: #{tpu_custom_call.1} parent=11 // pred_fallthru
          _
      $region12: #{tpu_custom_call.1} parent=5 // pred_fallthru
        _
      %p143 = scmp.lt.s32.totalorder %s12, 4
      // Predicated region
      $region21: #{tpu_custom_call.1} parent=5 // pred_check
        %p144 = pneg %p143
      $region22: #{tpu_custom_call.1} parent=5 // pred_check_branch
        %146 = sbr.rel (%p144) target = $region24
      $region23: #{tpu_custom_call.1} parent=5 // pred_region
        // Predicated region
        $region25: #{tpu_custom_call.1} parent=23 // pred_check
          %p147 = pneg %p46
        $region26: #{tpu_custom_call.1} parent=23 // pred_check_branch
          %149 = sbr.rel (%p147) target = $region28
        $region27: #{tpu_custom_call.1} parent=23 // pred_region
          %s150 = sand.u32 %s36, 1
          %s151 = sand.u32 %s36, 1
          %s152 = smul.addr %s151, 16
          %s153 = scalar_lea.vmem [#allocation3], %s152
          %s154 = smul.addr %s19, 8
          %s155 = sadd.s32 %s20, %s154
          %s156 = smul.addr %s155, 4
          %s157 = scalar_lea.vmem %s0, %s156
          // Predicated region
          $region29: #{tpu_custom_call.1} parent=27 // pred_check
            _
          $region30: #{tpu_custom_call.1} parent=27 // pred_check_branch
            %159 = sbr.rel (0) target = $region32
          $region31: #{tpu_custom_call.1} parent=27 // pred_region
            // Predicated region
            $region33: #{tpu_custom_call.1} parent=31 // pred_check
              _
            $region34: #{tpu_custom_call.1} parent=31 // pred_check_branch
              %161 = sbr.rel target = $region36
            $region35: #{tpu_custom_call.1} parent=31 // pred_region
              // Predicated region
              $region48: #{tpu_custom_call.1} parent=35 // pred_check
                _
              $region49: #{tpu_custom_call.1} parent=35 // pred_check_branch
                %183 = sbr.rel (0) target = $region51
              $region50: #{tpu_custom_call.1} parent=35 // pred_region
                loop: start=0, step=1, limit=1
                $region52: #{tpu_custom_call.1} parent=50 // loop_pre_header
                  _
                $region53: #{tpu_custom_call.1} parent=50 // loop_header
                  %s185 = sphi 0, %s189
                  %p186 = scmp.ge.s32.totalorder %s185, 1
                  %s190 = sphi %s157, %s157
                  %s191 = sphi %s153, %s153
                $region54: #{tpu_custom_call.1} parent=50 // loop_header_branch
                  %188 = sbr.rel (%p186) target = $region58
                $region55: #{tpu_custom_call.1} parent=50 // loop_body
                  _
                $region56: #{tpu_custom_call.1} parent=50 // loop_footer
                  %s189 = sadd.s32 1, %s185
                $region57: #{tpu_custom_call.1} parent=50 // loop_footer_branch
                  %184 = sbr.rel target = $region53
                $region58: #{tpu_custom_call.1} parent=50 // loop_exit
                  _
                %s193 = ssub.s32 16, 1
                loop: start=0, step=1, limit=1
                $region59: #{tpu_custom_call.1} parent=50 // loop_pre_header
                  _
                $region60: #{tpu_custom_call.1} parent=50 // loop_header
                  %s195 = sphi 0, %s199
                  %p196 = scmp.ge.s32.totalorder %s195, 1
                  %s200 = sphi %s157, %s157
                  %s201 = sphi %s153, %s153
                $region61: #{tpu_custom_call.1} parent=50 // loop_header_branch
                  %198 = sbr.rel (%p196) target = $region65
                $region62: #{tpu_custom_call.1} parent=50 // loop_body
                  %v202 = vld [vmem:[%s200] sm:%s193]
                  %203 = vst [vmem:[%s201] sm:%s193] %v202
                  %v204 = vld [vmem:[%s200 + $0x8] sm:%s193]
                  %205 = vst [vmem:[%s201 + $0x4] sm:%s193] %v204
                  %v206 = vld [vmem:[%s200 + $0x10] sm:%s193]
                  %207 = vst [vmem:[%s201 + $0x8] sm:%s193] %v206
                  %v208 = vld [vmem:[%s200 + $0x18] sm:%s193]
                  %209 = vst [vmem:[%s201 + $0xc] sm:%s193] %v208
                $region63: #{tpu_custom_call.1} parent=50 // loop_footer
                  %s199 = sadd.s32 1, %s195
                $region64: #{tpu_custom_call.1} parent=50 // loop_footer_branch
                  %194 = sbr.rel target = $region60
                $region65: #{tpu_custom_call.1} parent=50 // loop_exit
                  _
              $region51: #{tpu_custom_call.1} parent=35 // pred_fallthru
                _
            $region36: #{tpu_custom_call.1} parent=31 // pred_fallthru
              _
            // Predicated region
            $region37: #{tpu_custom_call.1} parent=31 // pred_check
              _
            $region38: #{tpu_custom_call.1} parent=31 // pred_check_branch
              %163 = sbr.rel (0) target = $region40
            $region39: #{tpu_custom_call.1} parent=31 // pred_region
              %s165 = ssub.s32 16, 1
              loop: start=0, step=1, limit=1
              $region41: #{tpu_custom_call.1} parent=39 // loop_pre_header
                _
              $region42: #{tpu_custom_call.1} parent=39 // loop_header
                %s167 = sphi 0, %s171
                %p168 = scmp.ge.s32.totalorder %s167, 1
                %s172 = sphi %s157, %s157
                %s173 = sphi %s153, %s153
              $region43: #{tpu_custom_call.1} parent=39 // loop_header_branch
                %170 = sbr.rel (%p168) target = $region47
              $region44: #{tpu_custom_call.1} parent=39 // loop_body
                %v174 = vld [vmem:[%s172] sm:%s165]
                %175 = vst [vmem:[%s173] sm:%s165] %v174
                %v176 = vld [vmem:[%s172 + $0x8] sm:%s165]
                %177 = vst [vmem:[%s173 + $0x4] sm:%s165] %v176
                %v178 = vld [vmem:[%s172 + $0x10] sm:%s165]
                %179 = vst [vmem:[%s173 + $0x8] sm:%s165] %v178
                %v180 = vld [vmem:[%s172 + $0x18] sm:%s165]
                %181 = vst [vmem:[%s173 + $0xc] sm:%s165] %v180
              $region45: #{tpu_custom_call.1} parent=39 // loop_footer
                %s171 = sadd.s32 1, %s167
              $region46: #{tpu_custom_call.1} parent=39 // loop_footer_branch
                %166 = sbr.rel target = $region42
              $region47: #{tpu_custom_call.1} parent=39 // loop_exit
                _
            $region40: #{tpu_custom_call.1} parent=31 // pred_fallthru
              _
          $region32: #{tpu_custom_call.1} parent=27 // pred_fallthru
            _
          %210 = vnop
        $region28: #{tpu_custom_call.1} parent=23 // pred_fallthru
          _
      $region24: #{tpu_custom_call.1} parent=5 // pred_fallthru
        _
      %p211 = scmp.le.s32.totalorder 1, %s12
      %p212 = scmp.lt.s32.totalorder %s12, 5
      %p213 = pnand %p211, %p212
      %p214 = pneg %p213
      // Predicated region
      $region66: #{tpu_custom_call.1} parent=5 // pred_check
        _
      $region67: #{tpu_custom_call.1} parent=5 // pred_check_branch
        %216 = sbr.rel (%p213) target = $region69
      $region68: #{tpu_custom_call.1} parent=5 // pred_region
        %s217 = ssub.s32 %s12, 1
        %s218 = sand.u32 %s39, 1
        %s219 = sand.u32 %s39, 1
        %s220 = smul.addr %s219, 16
        %s221 = scalar_lea.vmem [#allocation3], %s220
        // Predicated region
        $region70: #{tpu_custom_call.1} parent=68 // pred_check
          %p222 = pneg %p52
        $region71: #{tpu_custom_call.1} parent=68 // pred_check_branch
          %224 = sbr.rel (%p222) target = $region73
        $region72: #{tpu_custom_call.1} parent=68 // pred_region
          _
        $region73: #{tpu_custom_call.1} parent=68 // pred_fallthru
          _
        %s225 = sand.u32 %s39, 1
        %s226 = sand.u32 %s39, 1
        %s227 = smul.addr %s226, 16
        %s228 = scalar_lea.vmem [#allocation3], %s227
        %p229 = pneg %p52
        %p230 = pneg %p49
        %p231 = pneg %p73
        %p232 = pneg %p70
        %p233 = pneg %p94
        %p234 = pneg %p91
        %p235 = pneg %p122
        %p236 = pneg %p119
        %s237 = sand.u32 %s109, 1
        %s238 = scalar_lea.sflag [#allocation5], %s237
        %s239 = sand.u32 %s109, 1
        %s240 = smul.addr %s239, 32
        %s241 = scalar_lea.vmem [#allocation4], %s240
        %p243 = scmp.eq.s32.totalorder %s22, 0
        // Predicated region
        $region74: #{tpu_custom_call.1} parent=68 // pred_check
          %p244 = pneg %p243
        $region75: #{tpu_custom_call.1} parent=68 // pred_check_branch
          %246 = sbr.rel (%p244) target = $region77
        $region76: #{tpu_custom_call.1} parent=68 // pred_region
          %v247 = vld [vmem:[%s2] sm:$0xff]
          %v248 = vld [vmem:[%s2 + $0x8] sm:$0xff]
          %v249 = vld [vmem:[%s2 + $0x10] sm:$0xff]
          %v250 = vld [vmem:[%s2 + $0x18] sm:$0xff]
          %vm251 = vcmask 15360
          %252 = vst.msk [vmem:[#allocation2] sm:$0xff] %vm251, %v247
          %253 = vst.msk [vmem:[#allocation2 + $0x8] sm:$0xff] %vm251, %v248
          %254 = vst.msk [vmem:[#allocation2 + $0x10] sm:$0xff] %vm251, %v249
          %255 = vst.msk [vmem:[#allocation2 + $0x18] sm:$0xff] %vm251, %v250
        $region77: #{tpu_custom_call.1} parent=68 // pred_fallthru
          _
        %v256 = vld [vmem:[%s221] sm:$0xf]
        %v257 = vld [vmem:[%s221 + $0x4] sm:$0xf]
        %v258 = vld [vmem:[%s221 + $0x8] sm:$0xf]
        %v259 = vld [vmem:[%s221 + $0xc] sm:$0xf]
        %v260 = vld [vmem:[%s1] sm:$0xf]
        %v261 = vld [vmem:[%s1 + $0x4] sm:$0xf]
        %v262 = vld [vmem:[%s1 + $0x8] sm:$0xf]
        %v263 = vld [vmem:[%s1 + $0xc] sm:$0xf]
        %v264 = vld [vmem:[%s1 + $0x10] sm:$0xf]
        %v265 = vld [vmem:[%s1 + $0x14] sm:$0xf]
        %v266 = vld [vmem:[%s1 + $0x18] sm:$0xf]
        %v267 = vld [vmem:[%s1 + $0x1c] sm:$0xf]
        %v276 = vunpack.c.l.b16 %v260
        %v277 = vunpack.c.l.b16 %v261
        %v278 = vunpack.c.l.b16 %v262
        %v279 = vunpack.c.l.b16 %v263
        %v280 = vunpack.c.l.b16 %v264
        %v281 = vunpack.c.l.b16 %v265
        %v282 = vunpack.c.l.b16 %v266
        %v283 = vunpack.c.l.b16 %v267
        %v284 = vpack.c.b16 %v277, %v276
        %v285 = vpack.c.b16 %v279, %v278
        %v286 = vpack.c.b16 %v281, %v280
        %v287 = vpack.c.b16 %v283, %v282
        %v292 = vunpack.c.l.b16 %v256
        %v293 = vunpack.c.l.b16 %v257
        %v294 = vunpack.c.l.b16 %v258
        %v295 = vunpack.c.l.b16 %v259
        %v296 = vpack.c.b16 %v293, %v292
        %v297 = vpack.c.b16 %v295, %v294
        %vm300 = vcmask 261120
        %v302 = vsel %vm300, %v284, 0
        %v305 = vsel %vm300, %v285, 0
        %v308 = vsel %vm300, %v286, 0
        %v311 = vsel %vm300, %v287, 0
        %313 = vmatpush.bf16.msra.mxu0 0
        %314 = vmatpush.bf16.msra.mxu0 0
        %315 = vmatpush.bf16.msra.mxu0 0
        %316 = vmatpush.bf16.msra.mxu0 0
        %317 = vmatpush.bf16.msra.mxu0 0
        %318 = vmatpush.bf16.msra.mxu0 0
        %319 = vmatpush.bf16.msra.mxu0 %v297
        %320 = vmatpush.bf16.msra.mxu0 %v296
        %321 = vmatmul.bf16.gmra.mxu0 %v302
        %v322 = vpop.f32.mrf.mxu0
        %v323 = vadd.f32 0.0, %v322
        %v324 = vpop.f32.mrf.mxu0
        %v325 = vadd.f32 0.0, %v324
        %326 = vmatmul.bf16.gmra.mxu0 %v305
        %v327 = vpop.f32.mrf.mxu0
        %v328 = vadd.f32 0.0, %v327
        %v329 = vpop.f32.mrf.mxu0
        %v330 = vadd.f32 0.0, %v329
        %331 = vmatmul.bf16.gmra.mxu0 %v308
        %v332 = vpop.f32.mrf.mxu0
        %v333 = vadd.f32 0.0, %v332
        %v334 = vpop.f32.mrf.mxu0
        %v335 = vadd.f32 0.0, %v334
        %336 = vmatmul.bf16.gmra.mxu0 %v311
        %v337 = vpop.f32.mrf.mxu0
        %v338 = vadd.f32 0.0, %v337
        %v339 = vpop.f32.mrf.mxu0
        %v340 = vadd.f32 0.0, %v339
        %341 = vdwg.mxu0
        %v342 = vld [vmem:[#allocation2] sm:$0xff]
        %v343 = vld [vmem:[#allocation2 + $0x8] sm:$0xff]
        %v344 = vld [vmem:[#allocation2 + $0x10] sm:$0xff]
        %v345 = vld [vmem:[#allocation2 + $0x18] sm:$0xff]
        %350 = vrot.lane.b32.xlu0 %v333, 2
        %v351 = vpop.permute.xlu0 %350
        %352 = vrot.lane.b32.xlu0 %v335, 2
        %v353 = vpop.permute.xlu0 %352
        %354 = vrot.lane.b32.xlu0 %v338, 2
        %v355 = vpop.permute.xlu0 %354
        %356 = vrot.lane.b32.xlu0 %v340, 2
        %v357 = vpop.permute.xlu0 %356
        %vm362 = vcmask 15360
        %v363 = vsel %vm362, %v342, %v351
        %v364 = vsel %vm362, %v343, %v353
        %v365 = vsel %vm362, %v344, %v355
        %v366 = vsel %vm362, %v345, %v357
        %v367 = vadd.f32 %v323, %v363
        %v368 = vadd.f32 %v325, %v364
        %v369 = vadd.f32 %v328, %v365
        %v370 = vadd.f32 %v330, %v366
        %371 = vst [vmem:[%s241] sm:$0xff] %v367
        %372 = vst [vmem:[%s241 + $0x8] sm:$0xff] %v368
        %373 = vst [vmem:[%s241 + $0x10] sm:$0xff] %v369
        %374 = vst [vmem:[%s241 + $0x18] sm:$0xff] %v370
        %375 = vst.msk [vmem:[#allocation2] sm:$0xff] %vm362, %v351
        %376 = vst.msk [vmem:[#allocation2 + $0x8] sm:$0xff] %vm362, %v353
        %377 = vst.msk [vmem:[#allocation2 + $0x10] sm:$0xff] %vm362, %v355
        %378 = vst.msk [vmem:[#allocation2 + $0x18] sm:$0xff] %vm362, %v357
        %s379 = sand.u32 %s109, 1
        %s380 = scalar_lea.sflag [#allocation5], %s379
        %s381 = sand.u32 %s109, 1
        %s382 = smul.addr %s381, 32
        %s383 = scalar_lea.vmem [#allocation4], %s382
        // Predicated region
        $region78: #{tpu_custom_call.1} parent=68 // pred_check
          %p384 = pneg %p119
        $region79: #{tpu_custom_call.1} parent=68 // pred_check_branch
          %386 = sbr.rel (%p384) target = $region81
        $region80: #{tpu_custom_call.1} parent=68 // pred_region
          %388 = vsyncadd %s380, 0
          %s389 = smul.addr %s21, 8
          %s390 = sadd.s32 %s22, %s389
          %s391 = smul.addr %s390, 8
          %s392 = scalar_lea.hbm %s3, %s391
          %s393 = sshll.u32 %s383, 4
          %s394 = int_to_ptr.vmem [resolvable:$true] %s393
          %s395 = sshll.u32 %s392, 4
          %s396 = int_to_ptr.hbm [resolvable:$true] %s395
          %401 = dma.vmem_to_hbm [thread:$0]  %s394, 512, %s396, %s380, 128, 256, 8
        $region81: #{tpu_custom_call.1} parent=68 // pred_fallthru
          _
      $region69: #{tpu_custom_call.1} parent=5 // pred_fallthru
        _
      %p402 = scmp.le.s32.totalorder 2, %s12
      // Predicated region
      $region82: #{tpu_custom_call.1} parent=5 // pred_check
        %p403 = pneg %p402
      $region83: #{tpu_custom_call.1} parent=5 // pred_check_branch
        %405 = sbr.rel (%p403) target = $region85
      $region84: #{tpu_custom_call.1} parent=5 // pred_region
        %s406 = ssub.s32 %s12, 2
        // Predicated region
        $region86: #{tpu_custom_call.1} parent=84 // pred_check
          %p407 = pneg %p125
        $region87: #{tpu_custom_call.1} parent=84 // pred_check_branch
          %409 = sbr.rel (%p407) target = $region89
        $region88: #{tpu_custom_call.1} parent=84 // pred_region
          %s410 = sand.u32 %s110, 1
          %s411 = scalar_lea.sflag [#allocation5], %s410
          %s412 = sand.u32 %s110, 1
          %s413 = smul.addr %s412, 32
          %s414 = scalar_lea.vmem [#allocation4], %s413
          %416 = dma.done %s411, 512
        $region89: #{tpu_custom_call.1} parent=84 // pred_fallthru
          _
      $region85: #{tpu_custom_call.1} parent=5 // pred_fallthru
        _
    $region6: #{tpu_custom_call.1} parent=1 // loop_footer
      %s16 = sadd.s32 1, %s12
    $region7: #{tpu_custom_call.1} parent=1 // loop_footer_branch
      %11 = sbr.rel target = $region3
    $region8: #{tpu_custom_call.1} parent=1 // loop_exit
      _
    %417 = vsyncpa [#allocation5], 1
    %s418 = scalar_lea.sflag [#allocation5], 1
    %419 = vsyncpa %s418, 1

</llo_original>
